<compile_context>
chip_gen: v7x
topology: tpu7x:2x2x1
jax: 0.10.0
libtpu: 0.0.40
codegen_flags: <defaults>
</compile_context>

<pallas_src>
import functools

import jax
import jax.numpy as jnp
from jax.experimental import pallas as pl
from jax.experimental.pallas import tpu as pltpu


def _group_norm_kernel(eps, inv_n, inv_nm1, x_ref, g_ref, b_ref, o_ref):
    # x_ref/o_ref: (TN, G, S) tile; g_ref/b_ref: (G, S) resident per-element affine.
    x = x_ref[...]                                               # native dtype

    # One-pass statistics with f32 accumulation (no tile-wide f32 copy for bf16 inputs:
    # the casts below are per-vreg and feed straight into the reductions).
    s1 = jnp.sum(x, axis=-1, keepdims=True, dtype=jnp.float32)                  # (TN,G,1)
    s2 = jnp.sum(jnp.square(x.astype(jnp.float32)), axis=-1, keepdims=True)     # (TN,G,1)

    mean = s1 * inv_n
    var = (s2 - s1 * mean) * inv_nm1            # unbiased (S-1), matches torch.std default
    var = jnp.maximum(var, 0.0)                 # guard tiny negative from cancellation
    denom = jnp.sqrt(var) + eps                 # eps added to std, NOT to variance

    inv = pl.reciprocal(denom, approx=True)     # EUP slot
    inv = inv * (2.0 - denom * inv)             # one Newton step -> f32-accurate reciprocal

    y = (x.astype(jnp.float32) - mean) * inv    # (TN, G, S)
    y = y * g_ref[...] + b_ref[...]             # per-element affine, broadcast over TN
    o_ref[...] = y.astype(o_ref.dtype)


def group_batchnorm2d(x, gamma, beta, group_num=16, eps=1e-10):
    """Pallas equivalent of GroupBatchnorm2d.forward for an (N, C, H, W) input."""
    N, C, H, W = x.shape
    total = C * H * W
    assert total % group_num == 0, (C, H, W, group_num)
    S = total // group_num
    assert S > 1, "group size must be > 1 for unbiased std (torch.std)"

    # Flatten exactly like x.view(N, G, -1) (row-major over C, H, W).
    x_g = x.reshape(N, group_num, S)

    # Per-element gamma/beta in the same (G, S) layout: the element at flat position
    # p = g*S + s belongs to channel p // (H*W); broadcasting (C,1,1) -> (C,H,W) and
    # reshaping to (G, S) reproduces exactly that mapping.
    gamma_gs = jnp.broadcast_to(gamma.reshape(C, 1, 1), (C, H, W)).reshape(group_num, S)
    beta_gs = jnp.broadcast_to(beta.reshape(C, 1, 1), (C, H, W)).reshape(group_num, S)

    # --- batch tiling: this op is HBM-bound, so one grid step should move a few MiB ---
    per_sample_bytes = group_num * S * x.dtype.itemsize
    target_block_bytes = 4 << 20                     # ~4 MiB per input block
    tn_cap = max(1, target_block_bytes // per_sample_bytes)
    if N <= tn_cap:
        tn = N                                       # tiny problem: single grid step
    else:
        # large problem: keep >= ~8 grid steps for pipelining / v7x dual-core sharding
        tn = int(min(tn_cap, max(1, -(-N // 8))))
    grid_n = pl.cdiv(N, tn)

    kernel = functools.partial(
        _group_norm_kernel, float(eps), 1.0 / float(S), 1.0 / float(S - 1))

    y_g = pl.pallas_call(
        kernel,
        out_shape=jax.ShapeDtypeStruct((N, group_num, S), x.dtype),
        grid=(grid_n,),
        in_specs=[
            pl.BlockSpec((tn, group_num, S), lambda n: (n, 0, 0)),
            pl.BlockSpec((group_num, S), lambda n: (0, 0)),      # resident params
            pl.BlockSpec((group_num, S), lambda n: (0, 0)),
        ],
        out_specs=pl.BlockSpec((tn, group_num, S), lambda n: (n, 0, 0)),
        compiler_params=pltpu.CompilerParams(
            dimension_semantics=("parallel",),
            # 2 buffers x (in + out) x ~4 MiB block + resident (G,S) params ~= 16 MiB;
            # 32 MiB fits scoped/physical VMEM on v5e, v6e and v7x.
            vmem_limit_bytes=32 << 20,
        ),
    )(x_g, gamma_gs, beta_gs)
    return y_g.reshape(N, C, H, W)


def _reference(x, gamma, beta, group_num=16, eps=1e-10):
    # Pure-JAX reference mirroring the PyTorch module line-by-line.
    N, C, H, W = x.shape
    xg = x.reshape(N, group_num, -1).astype(jnp.float32)
    mean = jnp.mean(xg, axis=2, keepdims=True)
    std = jnp.sqrt(jnp.var(xg, axis=2, ddof=1, keepdims=True))   # torch.std: unbiased
    xg = (xg - mean) / (std + eps)
    y = xg.reshape(N, C, H, W)
    return y * gamma.reshape(1, C, 1, 1) + beta.reshape(1, C, 1, 1)


if __name__ == "__main__":
    N, C, H, W = 2, 32, 16, 16
    GROUPS = 16          # module default group_num=16; group size S = C*H*W/G = 512
    EPS = 1e-10

    key = jax.random.PRNGKey(0)
    kx, kg, kb = jax.random.split(key, 3)
    x = jax.random.normal(kx, (N, C, H, W), dtype=jnp.float32)
    # Non-trivial affine params to exercise the gamma/beta path (module inits are 1/0).
    gamma = 1.0 + 0.1 * jax.random.normal(kg, (C,), dtype=jnp.float32)
    beta = 0.1 * jax.random.normal(kb, (C,), dtype=jnp.float32)

    fwd = jax.jit(functools.partial(group_batchnorm2d, group_num=GROUPS, eps=EPS))
    out = jax.block_until_ready(fwd(x, gamma, beta))

    ref = _reference(x, gamma, beta, group_num=GROUPS, eps=EPS)
    assert out.shape == (N, C, H, W), out.shape
    assert bool(jnp.all(jnp.isfinite(out)))
    assert bool(jnp.allclose(out, ref, rtol=1e-5, atol=1e-5)), float(
        jnp.max(jnp.abs(out - ref)))
    print("KERNEL_OK")
</pallas_src>

<mosaic_0001>
module attributes {stable_mosaic.version = 11 : i64} {
  func.func @_group_norm_kernel(%arg0: i32, %arg1: memref<2x16x512xf32, #tpu.memory_space<vmem>>, %arg2: memref<16x512xf32, #tpu.memory_space<vmem>>, %arg3: memref<16x512xf32, #tpu.memory_space<vmem>>, %arg4: memref<2x16x512xf32, #tpu.memory_space<vmem>>) attributes {dimension_semantics = [#tpu.dimension_semantics<parallel>], iteration_bounds = array<i64: 1>, scalar_prefetch = 0 : i64, scratch_operands = 0 : i64, tpu.core_type = #tpu.core_type<tc>, window_params = [{transform_indices = @transform_0, window_bounds = array<i64: 2, 16, 512>}, {pipeline_mode = #tpu.pipeline_mode<synchronous>, transform_indices = @transform_1, window_bounds = array<i64: 16, 512>}, {pipeline_mode = #tpu.pipeline_mode<synchronous>, transform_indices = @transform_2, window_bounds = array<i64: 16, 512>}, {transform_indices = @transform_3, window_bounds = array<i64: 2, 16, 512>}]} {
    %c0 = arith.constant 0 : index
    %c0_0 = arith.constant 0 : index
    %c0_1 = arith.constant 0 : index
    %0 = vector.load %arg1[%c0, %c0_0, %c0_1] : memref<2x16x512xf32, #tpu.memory_space<vmem>>, vector<2x16x512xf32>
    %cst = arith.constant dense<0.000000e+00> : vector<2x16xf32>
    %1 = vector.multi_reduction <add>, %0, %cst [2] : vector<2x16x512xf32> to vector<2x16xf32>
    %2 = vector.shape_cast %1 : vector<2x16xf32> to vector<2x16x1xf32>
    %3 = arith.mulf %0, %0 : vector<2x16x512xf32>
    %cst_2 = arith.constant dense<0.000000e+00> : vector<2x16xf32>
    %4 = vector.multi_reduction <add>, %3, %cst_2 [2] : vector<2x16x512xf32> to vector<2x16xf32>
    %5 = vector.shape_cast %4 : vector<2x16xf32> to vector<2x16x1xf32>
    %cst_3 = arith.constant 0.001953125 : f32
    %6 = vector.broadcast %cst_3 : f32 to vector<2x16x1xf32>
    %7 = arith.mulf %2, %6 : vector<2x16x1xf32>
    %8 = arith.mulf %2, %7 : vector<2x16x1xf32>
    %9 = arith.subf %5, %8 : vector<2x16x1xf32>
    %cst_4 = arith.constant 0.00195694715 : f32
    %10 = vector.broadcast %cst_4 : f32 to vector<2x16x1xf32>
    %11 = arith.mulf %9, %10 : vector<2x16x1xf32>
    %cst_5 = arith.constant 0.000000e+00 : f32
    %12 = vector.broadcast %cst_5 : f32 to vector<2x16x1xf32>
    %13 = arith.maximumf %11, %12 : vector<2x16x1xf32>
    %14 = math.sqrt %13 : vector<2x16x1xf32>
    %cst_6 = arith.constant 1.000000e-10 : f32
    %15 = vector.broadcast %cst_6 : f32 to vector<2x16x1xf32>
    %16 = arith.addf %14, %15 : vector<2x16x1xf32>
    %17 = tpu.reciprocal %16 {approx = true} : vector<2x16x1xf32> -> vector<2x16x1xf32>
    %18 = arith.mulf %16, %17 : vector<2x16x1xf32>
    %cst_7 = arith.constant 2.000000e+00 : f32
    %19 = vector.broadcast %cst_7 : f32 to vector<2x16x1xf32>
    %20 = arith.subf %19, %18 : vector<2x16x1xf32>
    %21 = arith.mulf %17, %20 : vector<2x16x1xf32>
    %22 = vector.broadcast %7 : vector<2x16x1xf32> to vector<2x16x512xf32>
    %23 = arith.subf %0, %22 : vector<2x16x512xf32>
    %24 = vector.broadcast %21 : vector<2x16x1xf32> to vector<2x16x512xf32>
    %25 = arith.mulf %23, %24 : vector<2x16x512xf32>
    %c0_8 = arith.constant 0 : index
    %c0_9 = arith.constant 0 : index
    %26 = vector.load %arg2[%c0_8, %c0_9] : memref<16x512xf32, #tpu.memory_space<vmem>>, vector<16x512xf32>
    %27 = vector.shape_cast %26 : vector<16x512xf32> to vector<1x16x512xf32>
    %28 = vector.broadcast %27 : vector<1x16x512xf32> to vector<2x16x512xf32>
    %29 = arith.mulf %25, %28 : vector<2x16x512xf32>
    %c0_10 = arith.constant 0 : index
    %c0_11 = arith.constant 0 : index
    %30 = vector.load %arg3[%c0_10, %c0_11] : memref<16x512xf32, #tpu.memory_space<vmem>>, vector<16x512xf32>
    %31 = vector.shape_cast %30 : vector<16x512xf32> to vector<1x16x512xf32>
    %32 = vector.broadcast %31 : vector<1x16x512xf32> to vector<2x16x512xf32>
    %33 = arith.addf %29, %32 : vector<2x16x512xf32>
    %c0_12 = arith.constant 0 : index
    %c0_13 = arith.constant 0 : index
    %c0_14 = arith.constant 0 : index
    %34 = vector.load %arg4[%c0_12, %c0_13, %c0_14] : memref<2x16x512xf32, #tpu.memory_space<vmem>>, vector<2x16x512xf32>
    tpu.vector_store %arg4[%c0_12, %c0_13, %c0_14], %33 {strides = array<i32>} : memref<2x16x512xf32, #tpu.memory_space<vmem>>, vector<2x16x512xf32>,
    return
  }
  func.func @transform_0(%arg0: i32) -> (i32, i32, i32) {
    %c0_i32 = arith.constant 0 : i32
    %c0_i32_0 = arith.constant 0 : i32
    %c0_i32_1 = arith.constant 0 : i32
    return %arg0, %c0_i32, %c0_i32_0 : i32, i32, i32
  }
  func.func @transform_1(%arg0: i32) -> (i32, i32) {
    %c0_i32 = arith.constant 0 : i32
    %c0_i32_0 = arith.constant 0 : i32
    %c0_i32_1 = arith.constant 0 : i32
    return %c0_i32, %c0_i32_0 : i32, i32
  }
  func.func @transform_2(%arg0: i32) -> (i32, i32) {
    %c0_i32 = arith.constant 0 : i32
    %c0_i32_0 = arith.constant 0 : i32
    %c0_i32_1 = arith.constant 0 : i32
    return %c0_i32, %c0_i32_0 : i32, i32
  }
  func.func @transform_3(%arg0: i32) -> (i32, i32, i32) {
    %c0_i32 = arith.constant 0 : i32
    %c0_i32_0 = arith.constant 0 : i32
    %c0_i32_1 = arith.constant 0 : i32
    return %arg0, %c0_i32, %c0_i32_0 : i32, i32, i32
  }
}

</mosaic_0001>

<llo_original>
// kernel: group_batchnorm2d.1
$region0: #{group_batchnorm2d.1}
  #allocation0 [shape = 'u32[]', space=smem, size = 0x4, offset = 0x4, fixed_abs, tag = 'smem constant byte address 0x4 - core index']
  #allocation1 [shape = 'u32[144,128]{1,0:T(1,128)}', space=vmem, size = 0x12000, scoped, tag = 'internal scratch']
  %s0 = inlined_call_operand.vmem [shape: f32[2,16,512], index: 0, kind: input, shape index: {}]
  %s1 = inlined_call_operand.vmem [shape: f32[16,512], index: 1, kind: input, shape index: {}]
  %s2 = inlined_call_operand.vmem [shape: f32[16,512], index: 2, kind: input, shape index: {}]
  %s3 = inlined_call_operand.vmem [shape: f32[2,16,512], index: 3, kind: output, shape index: {}]
  %s4 = sld [smem:[#allocation0]]
  $region22: #{group_batchnorm2d.1} parent=0
    _
  %s6 = ssub.s32 1, %s4
  %s7 = scalar_select 0, %s6, %s4
  // Predicated region
  $region2: #{group_batchnorm2d.1} parent=0 // pred_check
    _
  $region3: #{group_batchnorm2d.1} parent=0 // pred_check_branch
    %9 = sbr.rel (0) target = $region5
  $region4: #{group_batchnorm2d.1} parent=0 // pred_region
    _
  $region5: #{group_batchnorm2d.1} parent=0 // pred_fallthru
    _
  // Predicated region
  $region6: #{group_batchnorm2d.1} parent=0 // pred_check
    _
  $region7: #{group_batchnorm2d.1} parent=0 // pred_check_branch
    %11 = sbr.rel (0) target = $region9
  $region8: #{group_batchnorm2d.1} parent=0 // pred_region
    _
  $region9: #{group_batchnorm2d.1} parent=0 // pred_fallthru
    _
  // Predicated region
  $region10: #{group_batchnorm2d.1} parent=0 // pred_check
    _
  $region11: #{group_batchnorm2d.1} parent=0 // pred_check_branch
    %13 = sbr.rel (0) target = $region13
  $region12: #{group_batchnorm2d.1} parent=0 // pred_region
    _
  $region13: #{group_batchnorm2d.1} parent=0 // pred_fallthru
    _
  %v14 = vld [vmem:[%s0] sm:$0xff]
  %v15 = vld [vmem:[%s0 + $0x8] sm:$0xff]
  %v16 = vld [vmem:[%s0 + $0x10] sm:$0xff]
  %v17 = vld [vmem:[%s0 + $0x18] sm:$0xff]
  %v18 = vld [vmem:[%s0 + $0x20] sm:$0xff]
  %v19 = vld [vmem:[%s0 + $0x28] sm:$0xff]
  %v20 = vld [vmem:[%s0 + $0x30] sm:$0xff]
  %v21 = vld [vmem:[%s0 + $0x38] sm:$0xff]
  %v22 = vld [vmem:[%s0 + $0x40] sm:$0xff]
  %v23 = vld [vmem:[%s0 + $0x48] sm:$0xff]
  %v24 = vld [vmem:[%s0 + $0x50] sm:$0xff]
  %v25 = vld [vmem:[%s0 + $0x58] sm:$0xff]
  %v26 = vld [vmem:[%s0 + $0x60] sm:$0xff]
  %v27 = vld [vmem:[%s0 + $0x68] sm:$0xff]
  %v28 = vld [vmem:[%s0 + $0x70] sm:$0xff]
  %v29 = vld [vmem:[%s0 + $0x78] sm:$0xff]
  %v30 = vadd.f32 %v14, %v15
  %v31 = vadd.f32 %v30, %v16
  %v32 = vadd.f32 %v31, %v17
  %33 = vadd.xlane.f32.xlu0 %v32
  %v34 = vpop.xlane.xlu0 %33
  %v35 = vadd.f32 %v18, %v19
  %v36 = vadd.f32 %v35, %v20
  %v37 = vadd.f32 %v36, %v21
  %38 = vadd.xlane.f32.xlu0 %v37
  %v39 = vpop.xlane.xlu0 %38
  %v40 = vadd.f32 %v22, %v23
  %v41 = vadd.f32 %v40, %v24
  %v42 = vadd.f32 %v41, %v25
  %43 = vadd.xlane.f32.xlu0 %v42
  %v44 = vpop.xlane.xlu0 %43
  %v45 = vadd.f32 %v26, %v27
  %v46 = vadd.f32 %v45, %v28
  %v47 = vadd.f32 %v46, %v29
  %48 = vadd.xlane.f32.xlu0 %v47
  %v49 = vpop.xlane.xlu0 %48
  %v50 = vmul.f32 %v14, %v14
  %v51 = vmul.f32 %v15, %v15
  %v52 = vmul.f32 %v16, %v16
  %v53 = vmul.f32 %v17, %v17
  %v54 = vmul.f32 %v18, %v18
  %v55 = vmul.f32 %v19, %v19
  %v56 = vmul.f32 %v20, %v20
  %v57 = vmul.f32 %v21, %v21
  %v58 = vmul.f32 %v22, %v22
  %v59 = vmul.f32 %v23, %v23
  %v60 = vmul.f32 %v24, %v24
  %v61 = vmul.f32 %v25, %v25
  %v62 = vmul.f32 %v26, %v26
  %v63 = vmul.f32 %v27, %v27
  %v64 = vmul.f32 %v28, %v28
  %v65 = vmul.f32 %v29, %v29
  %v66 = vadd.f32 %v50, %v51
  %v67 = vadd.f32 %v66, %v52
  %v68 = vadd.f32 %v67, %v53
  %69 = vadd.xlane.f32.xlu0 %v68
  %v70 = vpop.xlane.xlu0 %69
  %v71 = vadd.f32 %v54, %v55
  %v72 = vadd.f32 %v71, %v56
  %v73 = vadd.f32 %v72, %v57
  %74 = vadd.xlane.f32.xlu0 %v73
  %v75 = vpop.xlane.xlu0 %74
  %v76 = vadd.f32 %v58, %v59
  %v77 = vadd.f32 %v76, %v60
  %v78 = vadd.f32 %v77, %v61
  %79 = vadd.xlane.f32.xlu0 %v78
  %v80 = vpop.xlane.xlu0 %79
  %v81 = vadd.f32 %v62, %v63
  %v82 = vadd.f32 %v81, %v64
  %v83 = vadd.f32 %v82, %v65
  %84 = vadd.xlane.f32.xlu0 %v83
  %v85 = vpop.xlane.xlu0 %84
  %v86 = vmul.f32 %v34, 0.001953125
  %v87 = vmul.f32 %v39, 0.001953125
  %v88 = vmul.f32 %v44, 0.001953125
  %v89 = vmul.f32 %v49, 0.001953125
  %v90 = vmul.f32 %v34, %v86
  %v91 = vmul.f32 %v39, %v87
  %v92 = vmul.f32 %v44, %v88
  %v93 = vmul.f32 %v49, %v89
  %v94 = vsub.f32 %v70, %v90
  %v95 = vsub.f32 %v75, %v91
  %v96 = vsub.f32 %v80, %v92
  %v97 = vsub.f32 %v85, %v93
  %v98 = vmul.f32 %v94, 0.0019569471
  %v99 = vmul.f32 %v95, 0.0019569471
  %v100 = vmul.f32 %v96, 0.0019569471
  %v101 = vmul.f32 %v97, 0.0019569471
  %v102 = vmax.f32 %v98, 0.0
  %v103 = vmax.f32 %v99, 0.0
  %v104 = vmax.f32 %v100, 0.0
  %v105 = vmax.f32 %v101, 0.0
  %v106 = vrsqrt.pop %v102
  %v107 = vmul.f32 %v102, %v106
  %vm108 = vcmp.eq.f32.partialorder %v102, inf
  %v109 = vsel %vm108, %v102, %v107
  %vm110 = vcmp.eq.f32.partialorder %v102, 0.0
  %v111 = vand.u32 %v102, 2147483648
  %v112 = vsel %vm110, %v111, %v109
  %v113 = vrsqrt.pop %v103
  %v114 = vmul.f32 %v103, %v113
  %vm115 = vcmp.eq.f32.partialorder %v103, inf
  %v116 = vsel %vm115, %v103, %v114
  %vm117 = vcmp.eq.f32.partialorder %v103, 0.0
  %v118 = vand.u32 %v103, 2147483648
  %v119 = vsel %vm117, %v118, %v116
  %v120 = vrsqrt.pop %v104
  %v121 = vmul.f32 %v104, %v120
  %vm122 = vcmp.eq.f32.partialorder %v104, inf
  %v123 = vsel %vm122, %v104, %v121
  %vm124 = vcmp.eq.f32.partialorder %v104, 0.0
  %v125 = vand.u32 %v104, 2147483648
  %v126 = vsel %vm124, %v125, %v123
  %v127 = vrsqrt.pop %v105
  %v128 = vmul.f32 %v105, %v127
  %vm129 = vcmp.eq.f32.partialorder %v105, inf
  %v130 = vsel %vm129, %v105, %v128
  %vm131 = vcmp.eq.f32.partialorder %v105, 0.0
  %v132 = vand.u32 %v105, 2147483648
  %v133 = vsel %vm131, %v132, %v130
  %v134 = vadd.f32 %v112, 1e-10
  %v135 = vadd.f32 %v119, 1e-10
  %v136 = vadd.f32 %v126, 1e-10
  %v137 = vadd.f32 %v133, 1e-10
  %v138 = vrcp.pop %v134
  %v139 = vrcp.pop %v135
  %v140 = vrcp.pop %v136
  %v141 = vrcp.pop %v137
  %v142 = vmul.f32 %v134, %v138
  %v143 = vmul.f32 %v135, %v139
  %v144 = vmul.f32 %v136, %v140
  %v145 = vmul.f32 %v137, %v141
  %v146 = vsub.f32 2.0, %v142
  %v147 = vsub.f32 2.0, %v143
  %v148 = vsub.f32 2.0, %v144
  %v149 = vsub.f32 2.0, %v145
  %v150 = vmul.f32 %v138, %v146
  %v151 = vmul.f32 %v139, %v147
  %v152 = vmul.f32 %v140, %v148
  %v153 = vmul.f32 %v141, %v149
  %v154 = vsub.f32 %v14, %v86
  %v155 = vsub.f32 %v15, %v86
  %v156 = vsub.f32 %v16, %v86
  %v157 = vsub.f32 %v17, %v86
  %v158 = vsub.f32 %v18, %v87
  %v159 = vsub.f32 %v19, %v87
  %v160 = vsub.f32 %v20, %v87
  %v161 = vsub.f32 %v21, %v87
  %v162 = vsub.f32 %v22, %v88
  %v163 = vsub.f32 %v23, %v88
  %v164 = vsub.f32 %v24, %v88
  %v165 = vsub.f32 %v25, %v88
  %v166 = vsub.f32 %v26, %v89
  %v167 = vsub.f32 %v27, %v89
  %v168 = vsub.f32 %v28, %v89
  %v169 = vsub.f32 %v29, %v89
  %v170 = vmul.f32 %v154, %v150
  %v171 = vmul.f32 %v155, %v150
  %v172 = vmul.f32 %v156, %v150
  %v173 = vmul.f32 %v157, %v150
  %v174 = vmul.f32 %v158, %v151
  %v175 = vmul.f32 %v159, %v151
  %v176 = vmul.f32 %v160, %v151
  %v177 = vmul.f32 %v161, %v151
  %v178 = vmul.f32 %v162, %v152
  %v179 = vmul.f32 %v163, %v152
  %v180 = vmul.f32 %v164, %v152
  %v181 = vmul.f32 %v165, %v152
  %v182 = vmul.f32 %v166, %v153
  %v183 = vmul.f32 %v167, %v153
  %v184 = vmul.f32 %v168, %v153
  %v185 = vmul.f32 %v169, %v153
  %v186 = vld [vmem:[%s1] sm:$0xff]
  %v187 = vld [vmem:[%s1 + $0x8] sm:$0xff]
  %v188 = vld [vmem:[%s1 + $0x10] sm:$0xff]
  %v189 = vld [vmem:[%s1 + $0x18] sm:$0xff]
  %v190 = vld [vmem:[%s1 + $0x20] sm:$0xff]
  %v191 = vld [vmem:[%s1 + $0x28] sm:$0xff]
  %v192 = vld [vmem:[%s1 + $0x30] sm:$0xff]
  %v193 = vld [vmem:[%s1 + $0x38] sm:$0xff]
  %v194 = vmul.f32 %v170, %v186
  %v195 = vmul.f32 %v171, %v187
  %v196 = vmul.f32 %v172, %v188
  %v197 = vmul.f32 %v173, %v189
  %v198 = vmul.f32 %v174, %v190
  %v199 = vmul.f32 %v175, %v191
  %v200 = vmul.f32 %v176, %v192
  %v201 = vmul.f32 %v177, %v193
  %v202 = vmul.f32 %v178, %v186
  %v203 = vmul.f32 %v179, %v187
  %v204 = vmul.f32 %v180, %v188
  %v205 = vmul.f32 %v181, %v189
  %v206 = vmul.f32 %v182, %v190
  %v207 = vmul.f32 %v183, %v191
  %v208 = vmul.f32 %v184, %v192
  %v209 = vmul.f32 %v185, %v193
  %v210 = vld [vmem:[%s2] sm:$0xff]
  %v211 = vld [vmem:[%s2 + $0x8] sm:$0xff]
  %v212 = vld [vmem:[%s2 + $0x10] sm:$0xff]
  %v213 = vld [vmem:[%s2 + $0x18] sm:$0xff]
  %v214 = vld [vmem:[%s2 + $0x20] sm:$0xff]
  %v215 = vld [vmem:[%s2 + $0x28] sm:$0xff]
  %v216 = vld [vmem:[%s2 + $0x30] sm:$0xff]
  %v217 = vld [vmem:[%s2 + $0x38] sm:$0xff]
  %v218 = vadd.f32 %v194, %v210
  %v219 = vadd.f32 %v195, %v211
  %v220 = vadd.f32 %v196, %v212
  %v221 = vadd.f32 %v197, %v213
  %v222 = vadd.f32 %v198, %v214
  %v223 = vadd.f32 %v199, %v215
  %v224 = vadd.f32 %v200, %v216
  %v225 = vadd.f32 %v201, %v217
  %v226 = vadd.f32 %v202, %v210
  %v227 = vadd.f32 %v203, %v211
  %v228 = vadd.f32 %v204, %v212
  %v229 = vadd.f32 %v205, %v213
  %v230 = vadd.f32 %v206, %v214
  %v231 = vadd.f32 %v207, %v215
  %v232 = vadd.f32 %v208, %v216
  %v233 = vadd.f32 %v209, %v217
  %234 = vst [vmem:[%s3] sm:$0xff] %v218
  %235 = vst [vmem:[%s3 + $0x8] sm:$0xff] %v219
  %236 = vst [vmem:[%s3 + $0x10] sm:$0xff] %v220
  %237 = vst [vmem:[%s3 + $0x18] sm:$0xff] %v221
  %238 = vst [vmem:[%s3 + $0x20] sm:$0xff] %v222
  %239 = vst [vmem:[%s3 + $0x28] sm:$0xff] %v223
  %240 = vst [vmem:[%s3 + $0x30] sm:$0xff] %v224
  %241 = vst [vmem:[%s3 + $0x38] sm:$0xff] %v225
  %242 = vst [vmem:[%s3 + $0x40] sm:$0xff] %v226
  %243 = vst [vmem:[%s3 + $0x48] sm:$0xff] %v227
  %244 = vst [vmem:[%s3 + $0x50] sm:$0xff] %v228
  %245 = vst [vmem:[%s3 + $0x58] sm:$0xff] %v229
  %246 = vst [vmem:[%s3 + $0x60] sm:$0xff] %v230
  %247 = vst [vmem:[%s3 + $0x68] sm:$0xff] %v231
  %248 = vst [vmem:[%s3 + $0x70] sm:$0xff] %v232
  %249 = vst [vmem:[%s3 + $0x78] sm:$0xff] %v233
  // Predicated region
  $region14: #{group_batchnorm2d.1} parent=0 // pred_check
    _
  $region15: #{group_batchnorm2d.1} parent=0 // pred_check_branch
    %251 = sbr.rel (0) target = $region17
  $region16: #{group_batchnorm2d.1} parent=0 // pred_region
    _
  $region17: #{group_batchnorm2d.1} parent=0 // pred_fallthru
    _
  // Predicated region
  $region18: #{group_batchnorm2d.1} parent=0 // pred_check
    _
  $region19: #{group_batchnorm2d.1} parent=0 // pred_check_branch
    %253 = sbr.rel (0) target = $region21
  $region20: #{group_batchnorm2d.1} parent=0 // pred_region
    _
  $region21: #{group_batchnorm2d.1} parent=0 // pred_fallthru
    _

</llo_original>
